<compile_context>
chip_gen: v7x
topology: tpu7x:2x2x1
jax: 0.10.0
libtpu: 0.0.40
codegen_flags: <defaults>
</compile_context>

<pallas_src>
import functools

import numpy as np
import jax
import jax.numpy as jnp
from jax.experimental import pallas as pl
from jax.experimental.pallas import tpu as pltpu


def make_kernel(k):
    """Normalized blur kernel (float64 mirror of the PyTorch make_kernel)."""
    k = np.asarray(k, dtype=np.float64)
    if k.ndim == 1:
        k = np.outer(k, k)
    return k / k.sum()


def _downsample_kernel(x_ref, w_ref, o_ref, xpad_ref, *, kv, factor, pad0,
                       out_h, out_w):
    """One block of `bimg` images: in-kernel pad, blur, downsample.

    x_ref   : (bimg, H, W)         unpadded input block
    w_ref   : (T, W, out_w)        horizontal FIR taps (T=1 separable, T=kh 2-D)
    o_ref   : (bimg, out_h, out_w) output block
    xpad_ref: (bimg, H_pad, W)     VMEM scratch holding the H-zero-padded block
    """
    bimg, h, w = x_ref.shape
    h_pad = xpad_ref.shape[1]
    pad1 = h_pad - h - pad0

    # Fold the spatial zero padding into the kernel (VMEM-only traffic).
    # Horizontal padding is already folded into w_ref, so only the kh-factor
    # extra rows need zeroing.  Re-zeroed every step (cheap: ~2 rows/img) so
    # the kernel stays correct under megacore grid splitting.
    if pad0 > 0:
        xpad_ref[:, :pad0, :] = jnp.zeros((bimg, pad0, w), xpad_ref.dtype)
    if pad1 > 0:
        xpad_ref[:, pad0 + h:, :] = jnp.zeros((bimg, pad1, w), xpad_ref.dtype)
    xpad_ref[:, pad0:pad0 + h, :] = x_ref[...]

    def tap_rows(i):
        # Strided sublane load: padded rows factor*y + i for y in [0, out_h).
        return xpad_ref[:, pl.ds(i, out_h, stride=factor), :]

    m = bimg * out_h
    if kv is not None:
        # Separable blur: vertical taps on the VPU (kh madds, f32 accumulate)...
        acc = kv[0] * tap_rows(0).astype(jnp.float32)
        for i in range(1, len(kv)):
            acc = acc + kv[i] * tap_rows(i).astype(jnp.float32)
        # ...then a single horizontal matmul on the MXU.
        lhs = acc.reshape(m, w).astype(w_ref.dtype)
        res = jnp.dot(lhs, w_ref[0], preferred_element_type=jnp.float32)
    else:
        # Non-separable 2-D kernel: kh accumulated small matmuls
        # (no dense K = kh*W weight, no lane-axis concat).
        res = jnp.zeros((m, out_w), jnp.float32)
        for i in range(w_ref.shape[0]):
            lhs = tap_rows(i).reshape(m, w).astype(w_ref.dtype)
            res = res + jnp.dot(lhs, w_ref[i], preferred_element_type=jnp.float32)

    o_ref[...] = res.reshape(bimg, out_h, out_w).astype(o_ref.dtype)


def _pick_block_imgs(nc, out_h, img_in_bytes, per_img_bytes, weight_buf_bytes):
    """Images per grid step: fill MXU / DMA, fit VMEM, keep >= 2 grid steps."""
    budget = 32 * 1024 * 1024                        # block budget (weights excluded below)
    b_vmem = max(1, (budget - weight_buf_bytes) // max(per_img_bytes, 1))
    b_mxu = -(-256 // max(out_h, 1))                 # M = bimg*out_h >= ~256 per MXU pass
    b_dma = -(-(4 << 20) // max(img_in_bytes, 1))    # >= ~4 MiB input DMA per grid step
    b_core = max(1, nc // 2)                         # >= 2 grid steps for the 2 v7x TCs
    bimg = max(1, min(max(b_mxu, b_dma), b_vmem, b_core, nc))
    # Prefer a block count dividing nc (no masked tail block) unless that would
    # shrink the block by more than 2x; otherwise rely on cdiv + edge masking.
    for d in range(bimg, 0, -1):
        if nc % d == 0 and 2 * d >= bimg:
            return d
    return bimg


def downsample(x, kernel=(1, 3, 3, 1), factor=2, mxu_dtype=None):
    """Pallas equivalent of Downsample.forward for NCHW `x`."""
    k_in = np.asarray(kernel, dtype=np.float64)
    separable = k_in.ndim == 1
    k2 = make_kernel(kernel)                         # (kh, kw), normalized
    kh, kw = k2.shape
    p = kh - factor
    if p < 0:
        # TODO(synk): negative padding (blur kernel shorter than factor).
        raise ValueError("blur kernel shorter than the downsample factor is unsupported")
    pad0, pad1 = (p + 1) // 2, p // 2

    n, c, h, w = x.shape
    h_pad = h + pad0 + pad1
    out_h = (h_pad - kh) // factor + 1
    out_w = (w + pad0 + pad1 - kw) // factor + 1

    mxu_dt = np.dtype(mxu_dtype) if mxu_dtype is not None else x.dtype
    mxu_item = np.dtype(mxu_dt).itemsize

    # Horizontal tap matrix over the *unpadded* width: left/right zero padding
    # is folded in by dropping taps that fall outside [0, w).  upfirdn2d does
    # true convolution, hence the flipped kernel.
    kflip = k2[::-1, ::-1]
    if separable:
        k1n = (k_in / k_in.sum())[::-1]              # flipped, normalized 1-D taps
        kv = tuple(float(v) for v in k1n)            # vertical taps (VPU constants)
        w_np = np.zeros((1, w, out_w), np.float64)
        for xo in range(out_w):
            for j in range(kw):
                cc = factor * xo + j - pad0
                if 0 <= cc < w:
                    w_np[0, cc, xo] += k1n[j]
    else:
        kv = None
        w_np = np.zeros((kh, w, out_w), np.float64)
        for i in range(kh):
            for xo in range(out_w):
                for j in range(kw):
                    cc = factor * xo + j - pad0
                    if 0 <= cc < w:
                        w_np[i, cc, xo] += kflip[i, j]
    # NOTE: for bf16 mxu_dtype the taps are quantized to bf16 (f32 accumulate).
    w_taps = jnp.asarray(w_np, dtype=mxu_dt)
    w_bytes = int(np.prod(w_taps.shape)) * mxu_item

    nc = n * c
    x_flat = x.reshape(nc, h, w)                     # contiguous -> free reshape

    in_item = int(x.dtype.itemsize)
    img_in = h * w * in_item                         # input block (double-buffered)
    img_out = out_h * out_w * in_item                # output block (double-buffered)
    img_pad = h_pad * w * in_item                    # VMEM scratch (single buffer)
    img_tmp = out_h * w * (4 + mxu_item) + out_h * out_w * 4
    per_img = 2 * (img_in + img_out) + img_pad + img_tmp

    bimg = _pick_block_imgs(nc, out_h, img_in, per_img, 2 * w_bytes)
    steps = pl.cdiv(nc, bimg)

    # Grid-invariant taps: single-buffer them once big enough to matter for the
    # VMEM budget (v7x: 32 MiB scoped default / 64 MiB physical per TC).
    w_spec_kw = dict(pipeline_mode=pl.Buffered(1)) if w_bytes > (1 << 20) else {}
    w_spec = pl.BlockSpec(w_taps.shape, lambda g: (0, 0, 0), **w_spec_kw)

    body = functools.partial(_downsample_kernel, kv=kv, factor=factor,
                             pad0=pad0, out_h=out_h, out_w=out_w)

    n_taps = 1 if separable else kh
    cost = pl.CostEstimate(
        flops=2 * nc * out_h * w * (kh + n_taps * out_w),
        transcendentals=0,
        bytes_accessed=nc * (img_in + img_out) + w_bytes,
    )

    out_flat = pl.pallas_call(
        body,
        out_shape=jax.ShapeDtypeStruct((nc, out_h, out_w), x.dtype),
        grid=(steps,),
        in_specs=[
            pl.BlockSpec((bimg, h, w), lambda g: (g, 0, 0)),
            w_spec,
        ],
        out_specs=pl.BlockSpec((bimg, out_h, out_w), lambda g: (g, 0, 0)),
        scratch_shapes=[pltpu.VMEM((bimg, h_pad, w), x.dtype)],
        compiler_params=pltpu.CompilerParams(
            dimension_semantics=("parallel",),
            vmem_limit_bytes=48 * 1024 * 1024,       # above v5e's 16 MiB default, < v7x physical
        ),
        cost_estimate=cost,
    )(x_flat, w_taps)

    return out_flat.reshape(n, c, out_h, out_w)


def _reference(x, kernel=(1, 3, 3, 1), factor=2):
    """Pure-JAX upfirdn2d(up=1, down=factor) reference for sanity checking."""
    k = make_kernel(kernel)
    kh, kw = k.shape
    p = kh - factor
    pad0, pad1 = (p + 1) // 2, p // 2
    n, c, h, w = x.shape
    out_h = (h + pad0 + pad1 - kh) // factor + 1
    out_w = (w + pad0 + pad1 - kw) // factor + 1
    xp = jnp.pad(x, ((0, 0), (0, 0), (pad0, pad1), (pad0, pad1)))
    kflip = k[::-1, ::-1]
    out = jnp.zeros((n, c, out_h, out_w), jnp.float32)
    for i in range(kh):
        for j in range(kw):
            sl = xp[:, :, i::factor, j::factor][:, :, :out_h, :out_w]
            out = out + float(kflip[i, j]) * sl
    return out.astype(x.dtype)


if __name__ == "__main__":
    key = jax.random.PRNGKey(0)
    x = jax.random.normal(key, (2, 4, 16, 16), dtype=jnp.float32)

    out = jax.block_until_ready(downsample(x, kernel=(1, 3, 3, 1), factor=2))
    ref = jax.block_until_ready(_reference(x, kernel=(1, 3, 3, 1), factor=2))

    assert out.shape == (2, 4, 8, 8), out.shape
    np.testing.assert_allclose(np.asarray(out), np.asarray(ref), rtol=1e-4, atol=1e-4)

    print("KERNEL_OK")
</pallas_src>

<mosaic_0001>
module attributes {stable_mosaic.version = 11 : i64} {
  func.func @_downsample_kernel(%arg0: i32, %arg1: memref<4x16x16xf32, #tpu.memory_space<vmem>>, %arg2: memref<1x16x8xf32, #tpu.memory_space<vmem>>, %arg3: memref<4x8x8xf32, #tpu.memory_space<vmem>>, %arg4: memref<4x18x16xf32, #tpu.memory_space<vmem>>) attributes {dimension_semantics = [#tpu.dimension_semantics<parallel>], iteration_bounds = array<i64: 2>, scalar_prefetch = 0 : i64, scratch_operands = 1 : i64, tpu.core_type = #tpu.core_type<tc>, window_params = [{transform_indices = @transform_0, window_bounds = array<i64: 4, 16, 16>}, {pipeline_mode = #tpu.pipeline_mode<synchronous>, transform_indices = @transform_1, window_bounds = array<i64: 1, 16, 8>}, {transform_indices = @transform_2, window_bounds = array<i64: 4, 8, 8>}]} {
    %cst = arith.constant 0.000000e+00 : f32
    %0 = vector.broadcast %cst : f32 to vector<4x1x16xf32>
    %c0 = arith.constant 0 : index
    %c0_0 = arith.constant 0 : index
    %c0_1 = arith.constant 0 : index
    %1 = vector.load %arg4[%c0, %c0_0, %c0_1] : memref<4x18x16xf32, #tpu.memory_space<vmem>>, vector<4x1x16xf32>
    tpu.vector_store %arg4[%c0, %c0_0, %c0_1], %0 {strides = array<i32>} : memref<4x18x16xf32, #tpu.memory_space<vmem>>, vector<4x1x16xf32>,
    %cst_2 = arith.constant 0.000000e+00 : f32
    %2 = vector.broadcast %cst_2 : f32 to vector<4x1x16xf32>
    %c0_3 = arith.constant 0 : index
    %c17 = arith.constant 17 : index
    %c0_4 = arith.constant 0 : index
    %3 = vector.load %arg4[%c0_3, %c17, %c0_4] : memref<4x18x16xf32, #tpu.memory_space<vmem>>, vector<4x1x16xf32>
    tpu.vector_store %arg4[%c0_3, %c17, %c0_4], %2 {strides = array<i32>} : memref<4x18x16xf32, #tpu.memory_space<vmem>>, vector<4x1x16xf32>,
    %c0_5 = arith.constant 0 : index
    %c0_6 = arith.constant 0 : index
    %c0_7 = arith.constant 0 : index
    %4 = vector.load %arg1[%c0_5, %c0_6, %c0_7] : memref<4x16x16xf32, #tpu.memory_space<vmem>>, vector<4x16x16xf32>
    %c0_8 = arith.constant 0 : index
    %c1 = arith.constant 1 : index
    %c0_9 = arith.constant 0 : index
    %5 = vector.load %arg4[%c0_8, %c1, %c0_9] : memref<4x18x16xf32, #tpu.memory_space<vmem>>, vector<4x16x16xf32>
    tpu.vector_store %arg4[%c0_8, %c1, %c0_9], %4 {strides = array<i32>} : memref<4x18x16xf32, #tpu.memory_space<vmem>>, vector<4x16x16xf32>,
    %c0_10 = arith.constant 0 : index
    %c0_11 = arith.constant 0 : index
    %c0_12 = arith.constant 0 : index
    %6 = tpu.strided_load %arg4[%c0_10, %c0_11, %c0_12] {strides = array<i32: 1, 2, 1>} : memref<4x18x16xf32, #tpu.memory_space<vmem>>, vector<4x8x16xf32>
    %cst_13 = arith.constant 1.250000e-01 : f32
    %7 = vector.broadcast %cst_13 : f32 to vector<4x8x16xf32>
    %8 = arith.mulf %7, %6 : vector<4x8x16xf32>
    %c0_14 = arith.constant 0 : index
    %c1_15 = arith.constant 1 : index
    %c0_16 = arith.constant 0 : index
    %9 = tpu.strided_load %arg4[%c0_14, %c1_15, %c0_16] {strides = array<i32: 1, 2, 1>} : memref<4x18x16xf32, #tpu.memory_space<vmem>>, vector<4x8x16xf32>
    %cst_17 = arith.constant 3.750000e-01 : f32
    %10 = vector.broadcast %cst_17 : f32 to vector<4x8x16xf32>
    %11 = arith.mulf %10, %9 : vector<4x8x16xf32>
    %12 = arith.addf %8, %11 : vector<4x8x16xf32>
    %c0_18 = arith.constant 0 : index
    %c2 = arith.constant 2 : index
    %c0_19 = arith.constant 0 : index
    %13 = tpu.strided_load %arg4[%c0_18, %c2, %c0_19] {strides = array<i32: 1, 2, 1>} : memref<4x18x16xf32, #tpu.memory_space<vmem>>, vector<4x8x16xf32>
    %cst_20 = arith.constant 3.750000e-01 : f32
    %14 = vector.broadcast %cst_20 : f32 to vector<4x8x16xf32>
    %15 = arith.mulf %14, %13 : vector<4x8x16xf32>
    %16 = arith.addf %12, %15 : vector<4x8x16xf32>
    %c0_21 = arith.constant 0 : index
    %c3 = arith.constant 3 : index
    %c0_22 = arith.constant 0 : index
    %17 = tpu.strided_load %arg4[%c0_21, %c3, %c0_22] {strides = array<i32: 1, 2, 1>} : memref<4x18x16xf32, #tpu.memory_space<vmem>>, vector<4x8x16xf32>
    %cst_23 = arith.constant 1.250000e-01 : f32
    %18 = vector.broadcast %cst_23 : f32 to vector<4x8x16xf32>
    %19 = arith.mulf %18, %17 : vector<4x8x16xf32>
    %20 = arith.addf %16, %19 : vector<4x8x16xf32>
    %21 = vector.shape_cast %20 : vector<4x8x16xf32> to vector<32x16xf32>
    %c0_24 = arith.constant 0 : index
    %c0_25 = arith.constant 0 : index
    %c0_26 = arith.constant 0 : index
    %22 = vector.load %arg2[%c0_24, %c0_25, %c0_26] : memref<1x16x8xf32, #tpu.memory_space<vmem>>, vector<1x16x8xf32>
    %23 = vector.shape_cast %22 : vector<1x16x8xf32> to vector<16x8xf32>
    %cst_27 = arith.constant dense<0.000000e+00> : vector<32x8xf32>
    %24 = tpu.matmul %21, %23, %cst_27 {dimension_numbers = #tpu.dot_dimension_numbers<[1], [0], [0], [1], [0, 0, 1, 1], [], []>} : vector<32x16xf32>, vector<16x8xf32>, vector<32x8xf32> -> vector<32x8xf32>
    %25 = vector.shape_cast %24 : vector<32x8xf32> to vector<4x8x8xf32>
    %c0_28 = arith.constant 0 : index
    %c0_29 = arith.constant 0 : index
    %c0_30 = arith.constant 0 : index
    %26 = vector.load %arg3[%c0_28, %c0_29, %c0_30] : memref<4x8x8xf32, #tpu.memory_space<vmem>>, vector<4x8x8xf32>
    tpu.vector_store %arg3[%c0_28, %c0_29, %c0_30], %25 {strides = array<i32>} : memref<4x8x8xf32, #tpu.memory_space<vmem>>, vector<4x8x8xf32>,
    return
  }
  func.func @transform_0(%arg0: i32) -> (i32, i32, i32) {
    %c0_i32 = arith.constant 0 : i32
    %c0_i32_0 = arith.constant 0 : i32
    %c0_i32_1 = arith.constant 0 : i32
    return %arg0, %c0_i32, %c0_i32_0 : i32, i32, i32
  }
  func.func @transform_1(%arg0: i32) -> (i32, i32, i32) {
    %c0_i32 = arith.constant 0 : i32
    %c0_i32_0 = arith.constant 0 : i32
    %c0_i32_1 = arith.constant 0 : i32
    %c0_i32_2 = arith.constant 0 : i32
    return %c0_i32, %c0_i32_0, %c0_i32_1 : i32, i32, i32
  }
  func.func @transform_2(%arg0: i32) -> (i32, i32, i32) {
    %c0_i32 = arith.constant 0 : i32
    %c0_i32_0 = arith.constant 0 : i32
    %c0_i32_1 = arith.constant 0 : i32
    return %arg0, %c0_i32, %c0_i32_0 : i32, i32, i32
  }
}

</mosaic_0001>

<llo_original>
// kernel: tpu_custom_call.1
$region0: #{tpu_custom_call.1}
  #allocation0 [shape = 'u32[]', space=smem, size = 0x4, offset = 0x4, fixed_abs, tag = 'smem constant byte address 0x4 - core index']
  #allocation1 [shape = 'u32[144,128]{1,0:T(1,128)}', space=vmem, size = 0x12000, scoped, tag = 'internal scratch']
  #allocation2 [shape = 'f32[4,18,16]{2,1,0:T(8,128)}', space=vmem, size = 0xc000, scoped, tag = 'scratch operand']
  %s0 = inlined_call_operand.hbm [shape: f32[8,16,16], index: 0, kind: input, shape index: {}]
  %s1 = inlined_call_operand.vmem [shape: f32[1,16,8], index: 1, kind: input, shape index: {}]
  %s2 = inlined_call_operand.hbm [shape: f32[8,8,8], index: 2, kind: output, shape index: {}]
  %s3 = sld [smem:[#allocation0]]
  $region45: #{tpu_custom_call.1} parent=0
    _
  %s5 = ssub.s32 1, %s3
  %s6 = scalar_select 0, %s5, %s3
  $region1: #{tpu_custom_call.1} parent=0
    #allocation3 [shape = 'u8[65536]{0}', space=vmem, size = 0x10000, scoped, tag = 'input window, operand 0']
    #allocation4 [shape = 's32[2]{0}', space=sflag, size = 0x8, scoped, tag = 'scoped memory for tpu_custom_call.1']
    #allocation5 [shape = 's32[2]{0}', space=sflag, size = 0x8, scoped, tag = 'scoped memory for tpu_custom_call.1']
    #allocation6 [shape = 'u8[32768]{0}', space=vmem, size = 0x8000, scoped, tag = 'output window, operand 0']
    %7 = vsyncpa [#allocation4], 0
    %s8 = scalar_lea.sflag [#allocation4], 1
    %9 = vsyncpa %s8, 0
    %10 = vsyncpa [#allocation5], 0
    %s11 = scalar_lea.sflag [#allocation5], 1
    %12 = vsyncpa %s11, 0
    loop: start=0, step=1, limit=4
    $region2: #{tpu_custom_call.1} parent=1 // loop_pre_header
      _
    $region3: #{tpu_custom_call.1} parent=1 // loop_header
      %s14 = sphi 0, %s18
      %p15 = scmp.ge.s32.totalorder %s14, 4
      %s24 = sphi 0, %s26
      %s27 = sphi 0, %s24
      %s28 = sphi 0, %s27
      %s44 = sphi 0, %s28
      %s48 = sphi 0, %s48
      %s50 = sphi 0, %s48
      %s51 = sphi 0, %s50
      %s65 = sphi 0, %s51
      %s71 = sphi 0, %s73
      %s74 = sphi 0, %s71
      %s75 = sphi 0, %s74
      %s91 = sphi 0, %s75
    $region4: #{tpu_custom_call.1} parent=1 // loop_header_branch
      %17 = sbr.rel (%p15) target = $region8
    $region5: #{tpu_custom_call.1} parent=1 // loop_body
      %s19 = ssub.s32 %s14, 1
      %s20 = ssub.s32 %s14, 2
      %s21 = sadd.s32 %s14, 1
      %s22 = ssub.s32 %s14, %s21
      %p23 = scmp.eq.s32.totalorder %s22, 0
      %s25 = sadd.s32 %s24, 1
      %s26 = scalar_select %p23, %s24, %s25
      %p29 = pneg %p23
      %p30 = scmp.eq.s32.totalorder %s14, 1
      %p31 = por %p29, %p30
      %p32 = scmp.ne.s32.totalorder %s24, %s27
      %p33 = scmp.eq.s32.totalorder %s14, 0
      %p34 = por %p32, %p33
      %p35 = scmp.ne.s32.totalorder %s24, %s27
      %p36 = scmp.eq.s32.totalorder %s19, 1
      %p37 = por %p35, %p36
      %p38 = scmp.ne.s32.totalorder %s27, %s28
      %p39 = scmp.eq.s32.totalorder %s19, 0
      %p40 = por %p38, %p39
      %p41 = scmp.ne.s32.totalorder %s27, %s28
      %p42 = scmp.eq.s32.totalorder %s20, 1
      %p43 = por %p41, %p42
      %p45 = scmp.ne.s32.totalorder %s28, %s44
      %p46 = scmp.eq.s32.totalorder %s20, 0
      %p47 = por %p45, %p46
      %s49 = sadd.s32 %s48, 1
      %p52 = scmp.eq.s32.totalorder %s14, 1
      %p53 = scmp.ne.s32.totalorder %s48, %s50
      %p54 = scmp.eq.s32.totalorder %s14, 0
      %p55 = por %p53, %p54
      %p56 = scmp.ne.s32.totalorder %s48, %s50
      %p57 = scmp.eq.s32.totalorder %s19, 1
      %p58 = por %p56, %p57
      %p59 = scmp.ne.s32.totalorder %s50, %s51
      %p60 = scmp.eq.s32.totalorder %s19, 0
      %p61 = por %p59, %p60
      %p62 = scmp.ne.s32.totalorder %s50, %s51
      %p63 = scmp.eq.s32.totalorder %s20, 1
      %p64 = por %p62, %p63
      %p66 = scmp.ne.s32.totalorder %s51, %s65
      %p67 = scmp.eq.s32.totalorder %s20, 0
      %p68 = por %p66, %p67
      %s69 = ssub.s32 %s14, %s21
      %p70 = scmp.eq.s32.totalorder %s69, 0
      %s72 = sadd.s32 %s71, 1
      %s73 = scalar_select %p70, %s71, %s72
      %p76 = pneg %p70
      %p77 = scmp.eq.s32.totalorder %s14, 1
      %p78 = por %p76, %p77
      %p79 = scmp.ne.s32.totalorder %s71, %s74
      %p80 = scmp.eq.s32.totalorder %s14, 0
      %p81 = por %p79, %p80
      %p82 = scmp.ne.s32.totalorder %s71, %s74
      %p83 = scmp.eq.s32.totalorder %s19, 1
      %p84 = por %p82, %p83
      %p85 = scmp.ne.s32.totalorder %s74, %s75
      %p86 = scmp.eq.s32.totalorder %s19, 0
      %p87 = por %p85, %p86
      %p88 = scmp.ne.s32.totalorder %s74, %s75
      %p89 = scmp.eq.s32.totalorder %s20, 1
      %p90 = por %p88, %p89
      %p92 = scmp.ne.s32.totalorder %s75, %s91
      %p93 = scmp.eq.s32.totalorder %s20, 0
      %p94 = por %p92, %p93
      %p95 = scmp.le.s32.totalorder 1, %s14
      %p96 = scmp.lt.s32.totalorder %s14, 3
      %p97 = pnand %p95, %p96
      %p98 = pneg %p97
      // Predicated region
      $region9: #{tpu_custom_call.1} parent=5 // pred_check
        _
      $region10: #{tpu_custom_call.1} parent=5 // pred_check_branch
        %100 = sbr.rel (%p97) target = $region12
      $region11: #{tpu_custom_call.1} parent=5 // pred_region
        %s101 = ssub.s32 %s14, 1
        // Predicated region
        $region13: #{tpu_custom_call.1} parent=11 // pred_check
          %p102 = pneg %p61
        $region14: #{tpu_custom_call.1} parent=11 // pred_check_branch
          %104 = sbr.rel (%p102) target = $region16
        $region15: #{tpu_custom_call.1} parent=11 // pred_region
          _
        $region16: #{tpu_custom_call.1} parent=11 // pred_fallthru
          _
      $region12: #{tpu_custom_call.1} parent=5 // pred_fallthru
        _
      %p105 = scmp.lt.s32.totalorder %s14, 2
      // Predicated region
      $region17: #{tpu_custom_call.1} parent=5 // pred_check
        %p106 = pneg %p105
      $region18: #{tpu_custom_call.1} parent=5 // pred_check_branch
        %108 = sbr.rel (%p106) target = $region20
      $region19: #{tpu_custom_call.1} parent=5 // pred_region
        // Predicated region
        $region21: #{tpu_custom_call.1} parent=19 // pred_check
          %p109 = pneg %p34
        $region22: #{tpu_custom_call.1} parent=19 // pred_check_branch
          %111 = sbr.rel (%p109) target = $region24
        $region23: #{tpu_custom_call.1} parent=19 // pred_region
          %s112 = sand.u32 %s24, 1
          %s113 = scalar_lea.sflag [#allocation4], %s112
          %s114 = sand.u32 %s24, 1
          %s115 = smul.addr %s114, 64
          %s116 = scalar_lea.vmem [#allocation3], %s115
          %s117 = smul.u32 4, %s14
          %s119 = ssub.s32 1024, 1024
          %120 = vsyncadd %s113, %s119
          %s121 = smul.addr %s117, 2
          %s122 = smul.addr %s121, 128
          %s123 = scalar_lea.hbm %s0, %s122
          %s124 = sshll.u32 %s116, 4
          %s125 = int_to_ptr.vmem [resolvable:$true] %s124
          %130 = dma.hbm_to_vmem [thread:$0]  %s123, 1024, %s125, %s113, 128, 128, 8
        $region24: #{tpu_custom_call.1} parent=19 // pred_fallthru
          _
      $region20: #{tpu_custom_call.1} parent=5 // pred_fallthru
        _
      %p131 = scmp.le.s32.totalorder 1, %s14
      %p132 = scmp.lt.s32.totalorder %s14, 3
      %p133 = pnand %p131, %p132
      %p134 = pneg %p133
      // Predicated region
      $region25: #{tpu_custom_call.1} parent=5 // pred_check
        _
      $region26: #{tpu_custom_call.1} parent=5 // pred_check_branch
        %136 = sbr.rel (%p133) target = $region28
      $region27: #{tpu_custom_call.1} parent=5 // pred_region
        %s137 = ssub.s32 %s14, 1
        %s138 = sand.u32 %s27, 1
        %s139 = scalar_lea.sflag [#allocation4], %s138
        %s140 = sand.u32 %s27, 1
        %s141 = smul.addr %s140, 64
        %s142 = scalar_lea.vmem [#allocation3], %s141
        // Predicated region
        $region29: #{tpu_custom_call.1} parent=27 // pred_check
          %p143 = pneg %p40
        $region30: #{tpu_custom_call.1} parent=27 // pred_check_branch
          %145 = sbr.rel (%p143) target = $region32
        $region31: #{tpu_custom_call.1} parent=27 // pred_region
          %146 = dma.done %s139, 1024
        $region32: #{tpu_custom_call.1} parent=27 // pred_fallthru
          _
        %s147 = sand.u32 %s27, 1
        %s148 = scalar_lea.sflag [#allocation4], %s147
        %s149 = sand.u32 %s27, 1
        %s150 = smul.addr %s149, 64
        %s151 = scalar_lea.vmem [#allocation3], %s150
        %p152 = pneg %p40
        %p153 = pneg %p37
        %p154 = pneg %p61
        %p155 = pneg %p58
        %p156 = pneg %p87
        %p157 = pneg %p84
        %s158 = sand.u32 %s74, 1
        %s159 = scalar_lea.sflag [#allocation5], %s158
        %s160 = sand.u32 %s74, 1
        %s161 = smul.addr %s160, 32
        %s162 = scalar_lea.vmem [#allocation6], %s161
        %s163 = smul.u32 4, %s19
        %s164 = smul.u32 4, %s19
        %vm165 = vcmask 122880
        %166 = vst.msk [vmem:[#allocation2] sm:$0x1] %vm165, 0.0
        %167 = vst.msk [vmem:[#allocation2 + $0x18] sm:$0x1] %vm165, 0.0
        %168 = vst.msk [vmem:[#allocation2 + $0x30] sm:$0x1] %vm165, 0.0
        %169 = vst.msk [vmem:[#allocation2 + $0x48] sm:$0x1] %vm165, 0.0
        %170 = vst.msk [vmem:[#allocation2 + $0x11] sm:$0x1] %vm165, 0.0
        %171 = vst.msk [vmem:[#allocation2 + $0x29] sm:$0x1] %vm165, 0.0
        %172 = vst.msk [vmem:[#allocation2 + $0x41] sm:$0x1] %vm165, 0.0
        %173 = vst.msk [vmem:[#allocation2 + $0x59] sm:$0x1] %vm165, 0.0
        %v174 = vld [vmem:[%s142] sm:$0xff]
        %v175 = vld [vmem:[%s142 + $0x8] sm:$0xff]
        %v176 = vld [vmem:[%s142 + $0x10] sm:$0xff]
        %v177 = vld [vmem:[%s142 + $0x18] sm:$0xff]
        %v178 = vld [vmem:[%s142 + $0x20] sm:$0xff]
        %v179 = vld [vmem:[%s142 + $0x28] sm:$0xff]
        %v180 = vld [vmem:[%s142 + $0x30] sm:$0xff]
        %v181 = vld [vmem:[%s142 + $0x38] sm:$0xff]
        %vm182 = vcmask 130048
        %183 = vst.msk [vmem:[#allocation2 + $0x1] sm:$0xff] %vm182, %v174
        %184 = vst.msk [vmem:[#allocation2 + $0x9] sm:$0xff] %vm182, %v175
        %185 = vst.msk [vmem:[#allocation2 + $0x19] sm:$0xff] %vm182, %v176
        %186 = vst.msk [vmem:[#allocation2 + $0x21] sm:$0xff] %vm182, %v177
        %187 = vst.msk [vmem:[#allocation2 + $0x31] sm:$0xff] %vm182, %v178
        %188 = vst.msk [vmem:[#allocation2 + $0x39] sm:$0xff] %vm182, %v179
        %189 = vst.msk [vmem:[#allocation2 + $0x49] sm:$0xff] %vm182, %v180
        %190 = vst.msk [vmem:[#allocation2 + $0x51] sm:$0xff] %vm182, %v181
        %v191 = vld [vmem:[#allocation2] ss:$2 sm:$0xff]
        %s192 = scalar_lea.vmem [#allocation2], 24
        %v193 = vld [vmem:[%s192] ss:$2 sm:$0xff]
        %s194 = scalar_lea.vmem [#allocation2], 48
        %v195 = vld [vmem:[%s194] ss:$2 sm:$0xff]
        %s196 = scalar_lea.vmem [#allocation2], 72
        %v197 = vld [vmem:[%s196] ss:$2 sm:$0xff]
        %v198 = vmul.f32 %v191, 0.125
        %v199 = vmul.f32 %v193, 0.125
        %v200 = vmul.f32 %v195, 0.125
        %v201 = vmul.f32 %v197, 0.125
        %s202 = scalar_lea.vmem [#allocation2], 1
        %v203 = vld [vmem:[%s202] ss:$2 sm:$0xff]
        %s204 = scalar_lea.vmem [#allocation2], 25
        %v205 = vld [vmem:[%s204] ss:$2 sm:$0xff]
        %s206 = scalar_lea.vmem [#allocation2], 49
        %v207 = vld [vmem:[%s206] ss:$2 sm:$0xff]
        %s208 = scalar_lea.vmem [#allocation2], 73
        %v209 = vld [vmem:[%s208] ss:$2 sm:$0xff]
        %v210 = vmul.f32 %v203, 0.375
        %v211 = vmul.f32 %v205, 0.375
        %v212 = vmul.f32 %v207, 0.375
        %v213 = vmul.f32 %v209, 0.375
        %v214 = vadd.f32 %v198, %v210
        %v215 = vadd.f32 %v199, %v211
        %v216 = vadd.f32 %v200, %v212
        %v217 = vadd.f32 %v201, %v213
        %s218 = scalar_lea.vmem [#allocation2], 2
        %v219 = vld [vmem:[%s218] ss:$2 sm:$0xff]
        %s220 = scalar_lea.vmem [#allocation2], 26
        %v221 = vld [vmem:[%s220] ss:$2 sm:$0xff]
        %s222 = scalar_lea.vmem [#allocation2], 50
        %v223 = vld [vmem:[%s222] ss:$2 sm:$0xff]
        %s224 = scalar_lea.vmem [#allocation2], 74
        %v225 = vld [vmem:[%s224] ss:$2 sm:$0xff]
        %v226 = vmul.f32 %v219, 0.375
        %v227 = vmul.f32 %v221, 0.375
        %v228 = vmul.f32 %v223, 0.375
        %v229 = vmul.f32 %v225, 0.375
        %v230 = vadd.f32 %v214, %v226
        %v231 = vadd.f32 %v215, %v227
        %v232 = vadd.f32 %v216, %v228
        %v233 = vadd.f32 %v217, %v229
        %s234 = scalar_lea.vmem [#allocation2], 3
        %v235 = vld [vmem:[%s234] ss:$2 sm:$0xff]
        %s236 = scalar_lea.vmem [#allocation2], 27
        %v237 = vld [vmem:[%s236] ss:$2 sm:$0xff]
        %s238 = scalar_lea.vmem [#allocation2], 51
        %v239 = vld [vmem:[%s238] ss:$2 sm:$0xff]
        %s240 = scalar_lea.vmem [#allocation2], 75
        %v241 = vld [vmem:[%s240] ss:$2 sm:$0xff]
        %v242 = vmul.f32 %v235, 0.125
        %v243 = vmul.f32 %v237, 0.125
        %v244 = vmul.f32 %v239, 0.125
        %v245 = vmul.f32 %v241, 0.125
        %v246 = vadd.f32 %v230, %v242
        %v247 = vadd.f32 %v231, %v243
        %v248 = vadd.f32 %v232, %v244
        %v249 = vadd.f32 %v233, %v245
        %v250 = vld [vmem:[%s1] sm:$0xff]
        %v251 = vld [vmem:[%s1 + $0x8] sm:$0xff]
        %v253 = vsel %vm182, %v246, 0
        %v256 = vsel %vm182, %v247, 0
        %v259 = vsel %vm182, %v248, 0
        %v262 = vsel %vm182, %v249, 0
        %264 = vmatprep.subr.mxu0 0.0
        %265 = vmatpush1.msra.mxu0 %v250
        %266 = vmatprep.subr.mxu0 0.0
        %267 = vmatpush1.msra.mxu0 %v251
        %268 = vmatprep.subr.mxu0 0.0
        %269 = vmatpush1.msra.mxu0 0.0
        %270 = vmatprep.subr.mxu0 0.0
        %271 = vmatpush1.msra.mxu0 0.0
        %272 = vmatprep.subr.mxu0 0.0
        %273 = vmatpush1.msra.mxu0 0.0
        %274 = vmatprep.subr.mxu0 0.0
        %275 = vmatpush1.msra.mxu0 0.0
        %276 = vmatprep.subr.mxu0 0.0
        %277 = vmatpush1.msra.mxu0 0.0
        %278 = vmatprep.subr.mxu0 0.0
        %279 = vmatpush1.msra.mxu0 0.0
        %280 = vmatprep.subr.mxu0 0.0
        %281 = vmatpush1.msra.mxu0 0.0
        %282 = vmatprep.subr.mxu0 0.0
        %283 = vmatpush1.msra.mxu0 0.0
        %284 = vmatprep.subr.mxu0 0.0
        %285 = vmatpush1.msra.mxu0 0.0
        %286 = vmatprep.subr.mxu0 0.0
        %287 = vmatpush1.msra.mxu0 0.0
        %288 = vmatprep.subr.mxu0 0.0
        %289 = vmatpush1.msra.mxu0 0.0
        %290 = vmatprep.subr.mxu0 0.0
        %291 = vmatpush1.msra.mxu0 0.0
        %292 = vmatprep.subr.mxu0 0.0
        %293 = vmatpush1.msra.mxu0 0.0
        %294 = vmatprep.subr.mxu0 0.0
        %295 = vmatpush1.msra.mxu0 0.0
        %296 = vmatprep.subr.mxu0 0.0
        %297 = vmatpush1.msra.mxu0 0.0
        %298 = vmatprep.subr.mxu0 0.0
        %299 = vmatpush1.msra.mxu0 0.0
        %300 = vmatprep.subr.mxu0 0.0
        %301 = vmatpush1.msra.mxu0 0.0
        %302 = vmatprep.subr.mxu0 0.0
        %303 = vmatpush1.msra.mxu0 0.0
        %304 = vmatprep.subr.mxu0 0.0
        %305 = vmatpush1.msra.mxu0 0.0
        %306 = vmatprep.subr.mxu0 0.0
        %307 = vmatpush1.msra.mxu0 0.0
        %308 = vmatprep.subr.mxu0 0.0
        %309 = vmatpush1.msra.mxu0 0.0
        %310 = vmatprep.subr.mxu0 0.0
        %311 = vmatpush1.msra.mxu0 0.0
        %312 = vmatprep.subr.mxu0 0.0
        %313 = vmatpush1.msra.mxu0 0.0
        %314 = vmatprep.subr.mxu0 0.0
        %315 = vmatpush1.msra.mxu0 0.0
        %316 = vmatprep.subr.mxu0 0.0
        %317 = vmatpush1.msra.mxu0 0.0
        %318 = vmatprep.subr.mxu0 0.0
        %319 = vmatpush1.msra.mxu0 0.0
        %320 = vmatprep.subr.mxu0 0.0
        %321 = vmatpush1.msra.mxu0 0.0
        %322 = vmatprep.subr.mxu0 0.0
        %323 = vmatpush1.msra.mxu0 0.0
        %324 = vmatprep.subr.mxu0 0.0
        %325 = vmatpush1.msra.mxu0 0.0
        %326 = vmatprep.subr.mxu0 0.0
        %327 = vmatpush1.msra.mxu0 0.0
        %328 = vmatprep.mubr.f32.mxu0 0.0
        %329 = vmatmul.mubr.f32.gmra.mrb[0].mxu0 %v253
        %v330 = vpop.f32.mrb[0].mxu0
        %v331 = vadd.f32 0.0, %v330
        %v332 = vpop.f32.mrb[0].mxu0
        %333 = vmatprep.mubr.f32.mxu0 0.0
        %334 = vmatmul.mubr.f32.gmra.mrb[0].mxu0 %v256
        %v335 = vpop.f32.mrb[0].mxu0
        %v336 = vadd.f32 0.0, %v335
        %v337 = vpop.f32.mrb[0].mxu0
        %338 = vmatprep.mubr.f32.mxu0 0.0
        %339 = vmatmul.mubr.f32.gmra.mrb[0].mxu0 %v259
        %v340 = vpop.f32.mrb[0].mxu0
        %v341 = vadd.f32 0.0, %v340
        %v342 = vpop.f32.mrb[0].mxu0
        %343 = vmatprep.mubr.f32.mxu0 0.0
        %344 = vmatmul.mubr.f32.gmra.mrb[0].mxu0 %v262
        %v345 = vpop.f32.mrb[0].mxu0
        %v346 = vadd.f32 0.0, %v345
        %v347 = vpop.f32.mrb[0].mxu0
        %348 = vdwg.mxu0
        %vm349 = vcmask 64512
        %350 = vst.msk [vmem:[%s162] sm:$0xff] %vm349, %v331
        %351 = vst.msk [vmem:[%s162 + $0x8] sm:$0xff] %vm349, %v336
        %352 = vst.msk [vmem:[%s162 + $0x10] sm:$0xff] %vm349, %v341
        %353 = vst.msk [vmem:[%s162 + $0x18] sm:$0xff] %vm349, %v346
        %s354 = sand.u32 %s74, 1
        %s355 = scalar_lea.sflag [#allocation5], %s354
        %s356 = sand.u32 %s74, 1
        %s357 = smul.addr %s356, 32
        %s358 = scalar_lea.vmem [#allocation6], %s357
        // Predicated region
        $region33: #{tpu_custom_call.1} parent=27 // pred_check
          %p359 = pneg %p84
        $region34: #{tpu_custom_call.1} parent=27 // pred_check_branch
          %361 = sbr.rel (%p359) target = $region36
        $region35: #{tpu_custom_call.1} parent=27 // pred_region
          %s362 = smul.u32 4, %s19
          %s364 = ssub.s32 512, 512
          %365 = vsyncadd %s355, %s364
          %s366 = smul.addr %s362, 128
          %s367 = scalar_lea.hbm %s2, %s366
          %s368 = sshll.u32 %s358, 4
          %s369 = int_to_ptr.vmem [resolvable:$true] %s368
          %374 = dma.vmem_to_hbm [thread:$0]  %s369, 512, %s367, %s355, 128, 128, 8
        $region36: #{tpu_custom_call.1} parent=27 // pred_fallthru
          _
      $region28: #{tpu_custom_call.1} parent=5 // pred_fallthru
        _
      %p375 = scmp.le.s32.totalorder 2, %s14
      // Predicated region
      $region37: #{tpu_custom_call.1} parent=5 // pred_check
        %p376 = pneg %p375
      $region38: #{tpu_custom_call.1} parent=5 // pred_check_branch
        %378 = sbr.rel (%p376) target = $region40
      $region39: #{tpu_custom_call.1} parent=5 // pred_region
        %s379 = ssub.s32 %s14, 2
        // Predicated region
        $region41: #{tpu_custom_call.1} parent=39 // pred_check
          %p380 = pneg %p90
        $region42: #{tpu_custom_call.1} parent=39 // pred_check_branch
          %382 = sbr.rel (%p380) target = $region44
        $region43: #{tpu_custom_call.1} parent=39 // pred_region
          %s383 = sand.u32 %s75, 1
          %s384 = scalar_lea.sflag [#allocation5], %s383
          %s385 = sand.u32 %s75, 1
          %s386 = smul.addr %s385, 32
          %s387 = scalar_lea.vmem [#allocation6], %s386
          %388 = dma.done %s384, 512
        $region44: #{tpu_custom_call.1} parent=39 // pred_fallthru
          _
      $region40: #{tpu_custom_call.1} parent=5 // pred_fallthru
        _
    $region6: #{tpu_custom_call.1} parent=1 // loop_footer
      %s18 = sadd.s32 1, %s14
    $region7: #{tpu_custom_call.1} parent=1 // loop_footer_branch
      %13 = sbr.rel target = $region3
    $region8: #{tpu_custom_call.1} parent=1 // loop_exit
      _
    %389 = vsyncpa [#allocation4], 1
    %s390 = scalar_lea.sflag [#allocation4], 1
    %391 = vsyncpa %s390, 1
    %392 = vsyncpa [#allocation5], 1
    %s393 = scalar_lea.sflag [#allocation5], 1
    %394 = vsyncpa %s393, 1

</llo_original>
